<compile_context>
chip_gen: v5e
topology: v5e:2x2
jax: 0.10.0
libtpu: 0.0.40
codegen_flags: <defaults>
</compile_context>

<pallas_src>
import functools

import jax
import jax.numpy as jnp
from jax import lax
from jax.experimental import pallas as pl
from jax.experimental.pallas import tpu as pltpu


def _round_up(x, m):
    return ((x + m - 1) // m) * m


# ---------------------------------------------------------------------------
# Kernel 1: fused A @ B.T (+ diagonal boost) with streaming per-row top-k.
#
# Grid: (M/tm, N/tn); the column axis is a reduction ("arbitrary").  Running
# top-k values / global column indices live in (tm, 128) VMEM scratch that is
# (re)initialized at j == 0 and written to the output only at the last j.
# All candidate column indices are globally unique (tile columns < Np,
# previously-kept indices come from earlier tiles, padding sentinels >= Np),
# so masking the selected candidate by its column index is exact.
# ---------------------------------------------------------------------------
def _topk_sim_kernel(a_ref, b_ref, idx_ref, vals_sc, cols_sc, *,
                     top_k, diag_boost, n_valid, n_pad):
    i = pl.program_id(0)
    j = pl.program_id(1)
    tm = a_ref.shape[0]
    tn = b_ref.shape[0]

    @pl.when(j == 0)
    def _():
        vals_sc[...] = jnp.full(vals_sc.shape, -jnp.inf, jnp.float32)
        # distinct sentinel column ids >= padded N (never collide with real cols)
        cols_sc[...] = (lax.broadcasted_iota(jnp.int32, cols_sc.shape, 1)
                        + jnp.int32(n_pad))

    # bf16 x bf16 -> f32 accumulate on the MXU
    sim = lax.dot_general(a_ref[...], b_ref[...], (((1,), (1,)), ((), ())),
                          preferred_element_type=jnp.float32)       # (tm, tn)

    col_g = lax.broadcasted_iota(jnp.int32, (tm, tn), 1) + j * tn
    if diag_boost != 0.0:
        row_g = lax.broadcasted_iota(jnp.int32, (tm, tn), 0) + i * tm
        sim = sim + jnp.where(row_g == col_g, jnp.float32(diag_boost),
                              jnp.float32(0.0))
    # mask padded columns so they never enter the top-k
    sim = jnp.where(col_g < n_valid, sim, -jnp.inf)

    # candidates = current tile + running top-k state (padded to 128 lanes)
    cand_v = jnp.concatenate([sim, vals_sc[...]], axis=1)           # (tm, tn+128)
    cand_c = jnp.concatenate([col_g, cols_sc[...]], axis=1)

    for t in range(top_k):
        m = jnp.max(cand_v, axis=1, keepdims=True)                  # (tm, 1)
        sel = jnp.min(jnp.where(cand_v == m, cand_c, jnp.int32(2 ** 30)),
                      axis=1, keepdims=True)                        # smallest-index tiebreak
        vals_sc[:, t:t + 1] = m
        cols_sc[:, t:t + 1] = sel
        cand_v = jnp.where(cand_c == sel, -jnp.inf, cand_v)

    @pl.when(j == pl.num_programs(1) - 1)
    def _():
        idx_ref[...] = cols_sc[...]          # lane-dense (tm, 128) int32 store


def topk_sim_bt(a, b, top_k, diag_boost=0.0, *, tile_m=512, tile_n=512,
                compute_dtype=jnp.bfloat16):
    """Row-wise top_k indices of (A @ B.T + diag_boost * I).  a:(M,d) b:(N,d)."""
    M, d = a.shape
    N, d2 = b.shape
    assert d == d2
    assert top_k <= 128 and top_k <= N

    tm = min(tile_m, _round_up(M, 8))
    tn = min(tile_n, _round_up(N, 128))
    Mp, Np = _round_up(M, tm), _round_up(N, tn)

    a_p = jnp.pad(a.astype(compute_dtype), ((0, Mp - M), (0, 0)))
    b_p = jnp.pad(b.astype(compute_dtype), ((0, Np - N), (0, 0)))

    idx = pl.pallas_call(
        functools.partial(_topk_sim_kernel, top_k=int(top_k),
                          diag_boost=float(diag_boost), n_valid=N, n_pad=Np),
        out_shape=jax.ShapeDtypeStruct((Mp, 128), jnp.int32),
        grid=(Mp // tm, Np // tn),
        in_specs=[
            pl.BlockSpec((tm, d), lambda i, j: (i, 0)),
            pl.BlockSpec((tn, d), lambda i, j: (j, 0)),
        ],
        out_specs=pl.BlockSpec((tm, 128), lambda i, j: (i, 0)),
        scratch_shapes=[pltpu.VMEM((tm, 128), jnp.float32),
                        pltpu.VMEM((tm, 128), jnp.int32)],
        compiler_params=pltpu.CompilerParams(
            dimension_semantics=("parallel", "arbitrary"),
            vmem_limit_bytes=32 * 1024 * 1024),
    )(a_p, b_p)
    return idx[:M, :top_k]


# ---------------------------------------------------------------------------
# Kernel 2: batched (all seeds) k-means assignment, lane-dense label output.
#   labels[s, i] = argmin_c ||x_i - cent_{s,c}||^2 = argmin_c (||c||^2 - 2 x_i.c)
# Distances are computed as (S*Cp, tm) so the label rows come out (1, tm)
# (lane-dense).  Padded centroid rows carry ||c||^2 = 1e30 and never win.
# ---------------------------------------------------------------------------
def _kmeans_assign_kernel(x_ref, c_ref, cn_ref, lab_ref, *, num_seeds, cp):
    dots = lax.dot_general(c_ref[...], x_ref[...], (((1,), (1,)), ((), ())),
                           preferred_element_type=jnp.float32)      # (S*Cp, tm)
    d2 = cn_ref[...] - 2.0 * dots          # ||x||^2 constant per point -> drop
    tm = x_ref.shape[0]
    idx0 = lax.broadcasted_iota(jnp.int32, (cp, tm), 0)
    for s in range(num_seeds):
        blk = d2[s * cp:(s + 1) * cp, :]                            # (Cp, tm)
        mn = jnp.min(blk, axis=0, keepdims=True)                    # (1, tm)
        lab = jnp.min(jnp.where(blk == mn, idx0, jnp.int32(2 ** 30)),
                      axis=0, keepdims=True)                        # (1, tm)
        lab_ref[s:s + 1, :] = lab.astype(jnp.int32)


def kmeans_assign_batched(x_p, n, cents, *, tm, n_pad):
    """x_p: (Np, d) bf16 (pre-padded, hoisted), cents: (S, C, d) -> (S, n) labels."""
    S, C, d = cents.shape
    Cp = _round_up(max(C, 8), 8)

    cf = cents.astype(jnp.float32)
    cnorm = jnp.sum(cf * cf, axis=-1)                               # (S, C)
    cn_p = (jnp.full((S, Cp), 1e30, jnp.float32).at[:, :C].set(cnorm)
            .reshape(S * Cp, 1))
    c_p = (jnp.zeros((S, Cp, d), jnp.bfloat16)
           .at[:, :C, :].set(cents.astype(jnp.bfloat16)).reshape(S * Cp, d))

    labels = pl.pallas_call(
        functools.partial(_kmeans_assign_kernel, num_seeds=S, cp=Cp),
        out_shape=jax.ShapeDtypeStruct((S, n_pad), jnp.int32),
        grid=(n_pad // tm,),
        in_specs=[
            pl.BlockSpec((tm, d), lambda i: (i, 0)),
            pl.BlockSpec((S * Cp, d), lambda i: (0, 0)),   # resident across grid
            pl.BlockSpec((S * Cp, 1), lambda i: (0, 0)),   # resident across grid
        ],
        out_specs=pl.BlockSpec((S, tm), lambda i: (0, i)),
        compiler_params=pltpu.CompilerParams(
            dimension_semantics=("parallel",),
            vmem_limit_bytes=32 * 1024 * 1024),
    )(x_p, c_p, cn_p)
    return labels[:, :n]


# ---------------------------------------------------------------------------
# K-means (Lloyd's), all seeds batched — stands in for faiss.Kmeans.
# ---------------------------------------------------------------------------
# TODO(synk): faiss.Kmeans replaced with deterministic Lloyd's k-means in JAX
# (same interface: returns per-point nearest-centroid labels per seed).
# TODO(synk): centroid-update partial sums could also be fused into the assign
# kernel (extra accumulator outputs) to avoid the one_hot materialization.
def kmeans_labels_batched(x, ncentroids, niter, seeds, *, tile_m=1024):
    n, d = x.shape
    S = len(seeds)
    xf = x.astype(jnp.float32)

    # hoisted once (was previously recomputed every Lloyd iteration per seed)
    tm = min(tile_m, _round_up(n, 8))
    n_pad = _round_up(n, tm)
    x_p = jnp.pad(x.astype(jnp.bfloat16), ((0, n_pad - n), (0, 0)))

    cents = []
    for seed in seeds:
        key = jax.random.PRNGKey(seed)
        init_idx = jax.random.choice(key, n, shape=(ncentroids,), replace=False)
        cents.append(xf[init_idx])
    cent = jnp.stack(cents, axis=0)                                 # (S, C, d)

    labels = jnp.zeros((S, n), jnp.int32)
    for _ in range(niter):
        labels = kmeans_assign_batched(x_p, n, cent, tm=tm, n_pad=n_pad)
        onehot = jax.nn.one_hot(labels, ncentroids, dtype=jnp.float32)  # (S,n,C)
        counts = onehot.sum(axis=1)                                     # (S,C)
        sums = jnp.einsum('snc,nd->scd', onehot, xf)                    # (S,C,d)
        cent = sums / jnp.maximum(counts, 1.0)[..., None]
    return labels


# ---------------------------------------------------------------------------
# Neighbor.forward
# ---------------------------------------------------------------------------
def neighbor_forward(adj, student, teacher, top_k, *,
                     num_centroids, num_kmeans, clus_num_iters):
    n_data, d = student.shape

    # fused: top_k indices of (student @ teacher.T + 10 * I), no (n,n) HBM trip
    I_knn = topk_sim_bt(student, teacher, top_k, diag_boost=10.0)   # (n, k) int32

    # k-means cluster labels, all seeds batched through one assign kernel
    seeds = [seed + 1234 for seed in range(num_kmeans)]
    cluster_labels = kmeans_labels_batched(
        teacher, num_centroids, clus_num_iters, seeds)              # (S, n)

    # globality: neighbor shares the query's cluster in ANY k-means run
    neigh_labels = cluster_labels[:, I_knn]                         # (S, n, k)
    own_labels = cluster_labels[:, :, None]                         # (S, n, 1)
    close = jnp.any(own_labels == neigh_labels, axis=0)             # (n, k)

    # locality: (i, knn) pairs that are also edges of adj; pos_ nonzeros are a
    # subset of the (i, I_knn[i, k]) pairs, so no dense (n, n) mask is built.
    adj_at_knn = jnp.take_along_axis(adj, I_knn, axis=1)            # (n, k)
    keep = (adj_at_knn != 0) | close                                # (n, k)

    # torch: pos_.coalesce()._indices() -> (2, nnz) sorted row-major; knn
    # columns are unique per row, so per-row column sort reproduces it.
    order = jnp.argsort(I_knn, axis=1)
    cols_sorted = jnp.take_along_axis(I_knn, order, axis=1)
    keep_sorted = jnp.take_along_axis(keep, order, axis=1)
    rows = jnp.broadcast_to(jnp.arange(n_data)[:, None], (n_data, top_k))

    # data-dependent nnz -> stays outside jit (use jnp.nonzero(..., size=n*k)
    # with fill if this path ever needs to be traced).
    sel = jnp.nonzero(keep_sorted.reshape(-1))[0]
    indices = jnp.stack([rows.reshape(-1)[sel],
                         cols_sorted.reshape(-1)[sel]]).astype(jnp.int32)
    return indices, top_k


if __name__ == "__main__":
    # Small deterministic example consistent with the module's forward.
    n_data, d = 32, 16
    top_k = 4
    num_centroids = 4
    num_kmeans = 2
    clus_num_iters = 5

    key = jax.random.PRNGKey(0)
    k_s, k_t, k_a = jax.random.split(key, 3)

    def l2norm(x):
        return x / jnp.linalg.norm(x, axis=-1, keepdims=True)

    # F.normalize(student/teacher) as done by AFGRL.forward before Neighbor
    student = l2norm(jax.random.normal(k_s, (n_data, d), dtype=jnp.float32))
    teacher = l2norm(jax.random.normal(k_t, (n_data, d), dtype=jnp.float32))

    # adjacency: random symmetric 0/1 matrix with self-loops (dense stand-in
    # for the sparse adj the torch module multiplies against)
    a = (jax.random.uniform(k_a, (n_data, n_data)) < 0.15).astype(jnp.float32)
    adj = jnp.clip(a + a.T + jnp.eye(n_data, dtype=jnp.float32), 0.0, 1.0)

    indices, k_out = neighbor_forward(
        adj, student, teacher, top_k,
        num_centroids=num_centroids,
        num_kmeans=num_kmeans,
        clus_num_iters=clus_num_iters,
    )
    jax.block_until_ready(indices)
    assert indices.shape[0] == 2 and indices.shape[1] >= n_data  # self-edges present
    assert indices.shape[1] <= n_data * top_k
    assert bool(jnp.all(indices[1] < n_data))                    # no padded cols leaked
    assert k_out == top_k
    print("KERNEL_OK")
</pallas_src>

<mosaic_0001>
module attributes {stable_mosaic.version = 11 : i64} {
  func.func @_topk_sim_kernel(%arg0: i32, %arg1: i32, %arg2: memref<32x16xbf16, #tpu.memory_space<vmem>>, %arg3: memref<128x16xbf16, #tpu.memory_space<vmem>>, %arg4: memref<32x128xi32, #tpu.memory_space<vmem>>, %arg5: memref<32x128xf32, #tpu.memory_space<vmem>>, %arg6: memref<32x128xi32, #tpu.memory_space<vmem>>) attributes {dimension_semantics = [#tpu.dimension_semantics<parallel>, #tpu.dimension_semantics<arbitrary>], iteration_bounds = array<i64: 1, 1>, scalar_prefetch = 0 : i64, scratch_operands = 2 : i64, tpu.core_type = #tpu.core_type<tc>, window_params = [{transform_indices = @transform_0, window_bounds = array<i64: 32, 16>}, {transform_indices = @transform_1, window_bounds = array<i64: 128, 16>}, {transform_indices = @transform_2, window_bounds = array<i64: 32, 128>}]} {
    %c0_i32 = arith.constant 0 : i32
    %0 = arith.cmpi eq, %arg1, %c0_i32 : i32
    %1 = arith.extui %0 : i1 to i32
    %c0_i32_0 = arith.constant 0 : i32
    %2 = arith.cmpi ne, %1, %c0_i32_0 : i32
    scf.if %2 {
      %cst_41 = arith.constant 0xFF800000 : f32
      %82 = vector.broadcast %cst_41 : f32 to vector<32x128xf32>
      %c0_42 = arith.constant 0 : index
      %c0_43 = arith.constant 0 : index
      %83 = vector.load %arg5[%c0_42, %c0_43] : memref<32x128xf32, #tpu.memory_space<vmem>>, vector<32x128xf32>
      tpu.vector_store %arg5[%c0_42, %c0_43], %82 {strides = array<i32>} : memref<32x128xf32, #tpu.memory_space<vmem>>, vector<32x128xf32>,
      %84 = tpu.iota {dimensions = array<i32: 1>} : vector<32x128xi32>
      %c128_i32_44 = arith.constant 128 : i32
      %85 = vector.broadcast %c128_i32_44 : i32 to vector<32x128xi32>
      %86 = arith.addi %84, %85 : vector<32x128xi32>
      %c0_45 = arith.constant 0 : index
      %c0_46 = arith.constant 0 : index
      %87 = vector.load %arg6[%c0_45, %c0_46] : memref<32x128xi32, #tpu.memory_space<vmem>>, vector<32x128xi32>
      tpu.vector_store %arg6[%c0_45, %c0_46], %86 {strides = array<i32>} : memref<32x128xi32, #tpu.memory_space<vmem>>, vector<32x128xi32>,
    } else {
    }
    %c0 = arith.constant 0 : index
    %c0_1 = arith.constant 0 : index
    %3 = vector.load %arg2[%c0, %c0_1] : memref<32x16xbf16, #tpu.memory_space<vmem>>, vector<32x16xbf16>
    %c0_2 = arith.constant 0 : index
    %c0_3 = arith.constant 0 : index
    %4 = vector.load %arg3[%c0_2, %c0_3] : memref<128x16xbf16, #tpu.memory_space<vmem>>, vector<128x16xbf16>
    %cst = arith.constant dense<0.000000e+00> : vector<32x128xf32>
    %5 = tpu.matmul %3, %4, %cst {dimension_numbers = #tpu.dot_dimension_numbers<[1], [1], [0], [0], [0, 0, 1, 0], [], []>} : vector<32x16xbf16>, vector<128x16xbf16>, vector<32x128xf32> -> vector<32x128xf32>
    %6 = tpu.iota {dimensions = array<i32: 1>} : vector<32x128xi32>
    %c128_i32 = arith.constant 128 : i32
    %7 = arith.muli %arg1, %c128_i32 : i32
    %8 = vector.broadcast %7 : i32 to vector<32x128xi32>
    %9 = arith.addi %6, %8 : vector<32x128xi32>
    %10 = tpu.iota {dimensions = array<i32: 0>} : vector<32x128xi32>
    %c32_i32 = arith.constant 32 : i32
    %11 = arith.muli %arg0, %c32_i32 : i32
    %12 = vector.broadcast %11 : i32 to vector<32x128xi32>
    %13 = arith.addi %10, %12 : vector<32x128xi32>
    %14 = arith.cmpi eq, %13, %9 : vector<32x128xi32>
    %cst_4 = arith.constant 1.000000e+01 : f32
    %cst_5 = arith.constant 0.000000e+00 : f32
    %15 = vector.broadcast %cst_4 : f32 to vector<32x128xf32>
    %16 = vector.broadcast %cst_5 : f32 to vector<32x128xf32>
    %17 = arith.select %14, %15, %16 : vector<32x128xi1>, vector<32x128xf32>
    %18 = arith.addf %5, %17 : vector<32x128xf32>
    %c32_i32_6 = arith.constant 32 : i32
    %19 = vector.broadcast %c32_i32_6 : i32 to vector<32x128xi32>
    %20 = arith.cmpi slt, %9, %19 : vector<32x128xi32>
    %cst_7 = arith.constant 0xFF800000 : f32
    %21 = vector.broadcast %cst_7 : f32 to vector<32x128xf32>
    %22 = arith.select %20, %18, %21 : vector<32x128xi1>, vector<32x128xf32>
    %c0_8 = arith.constant 0 : index
    %c0_9 = arith.constant 0 : index
    %23 = vector.load %arg5[%c0_8, %c0_9] : memref<32x128xf32, #tpu.memory_space<vmem>>, vector<32x128xf32>
    %24 = tpu.concatenate %22, %23 in 1 : vector<32x128xf32>, vector<32x128xf32> -> vector<32x256xf32>
    %c0_10 = arith.constant 0 : index
    %c0_11 = arith.constant 0 : index
    %25 = vector.load %arg6[%c0_10, %c0_11] : memref<32x128xi32, #tpu.memory_space<vmem>>, vector<32x128xi32>
    %26 = tpu.concatenate %9, %25 in 1 : vector<32x128xi32>, vector<32x128xi32> -> vector<32x256xi32>
    %cst_12 = arith.constant dense<0xFF800000> : vector<32xf32>
    %27 = vector.multi_reduction <maximumf>, %24, %cst_12 [1] : vector<32x256xf32> to vector<32xf32>
    %28 = vector.shape_cast %27 : vector<32xf32> to vector<32x1xf32>
    %29 = vector.broadcast %28 : vector<32x1xf32> to vector<32x256xf32>
    %30 = arith.cmpf oeq, %24, %29 : vector<32x256xf32>
    %c1073741824_i32 = arith.constant 1073741824 : i32
    %31 = vector.broadcast %c1073741824_i32 : i32 to vector<32x256xi32>
    %32 = arith.select %30, %26, %31 : vector<32x256xi1>, vector<32x256xi32>
    %cst_13 = arith.constant dense<2147483647> : vector<32xi32>
    %33 = vector.multi_reduction <minsi>, %32, %cst_13 [1] : vector<32x256xi32> to vector<32xi32>
    %34 = vector.shape_cast %33 : vector<32xi32> to vector<32x1xi32>
    %c0_14 = arith.constant 0 : index
    %c0_15 = arith.constant 0 : index
    %35 = vector.load %arg5[%c0_14, %c0_15] : memref<32x128xf32, #tpu.memory_space<vmem>>, vector<32x1xf32>
    tpu.vector_store %arg5[%c0_14, %c0_15], %28 {strides = array<i32>} : memref<32x128xf32, #tpu.memory_space<vmem>>, vector<32x1xf32>,
    %c0_16 = arith.constant 0 : index
    %c0_17 = arith.constant 0 : index
    %36 = vector.load %arg6[%c0_16, %c0_17] : memref<32x128xi32, #tpu.memory_space<vmem>>, vector<32x1xi32>
    tpu.vector_store %arg6[%c0_16, %c0_17], %34 {strides = array<i32>} : memref<32x128xi32, #tpu.memory_space<vmem>>, vector<32x1xi32>,
    %37 = vector.broadcast %34 : vector<32x1xi32> to vector<32x256xi32>
    %38 = arith.cmpi eq, %26, %37 : vector<32x256xi32>
    %cst_18 = arith.constant 0xFF800000 : f32
    %39 = vector.broadcast %cst_18 : f32 to vector<32x256xf32>
    %40 = arith.select %38, %39, %24 : vector<32x256xi1>, vector<32x256xf32>
    %cst_19 = arith.constant dense<0xFF800000> : vector<32xf32>
    %41 = vector.multi_reduction <maximumf>, %40, %cst_19 [1] : vector<32x256xf32> to vector<32xf32>
    %42 = vector.shape_cast %41 : vector<32xf32> to vector<32x1xf32>
    %43 = vector.broadcast %42 : vector<32x1xf32> to vector<32x256xf32>
    %44 = arith.cmpf oeq, %40, %43 : vector<32x256xf32>
    %c1073741824_i32_20 = arith.constant 1073741824 : i32
    %45 = vector.broadcast %c1073741824_i32_20 : i32 to vector<32x256xi32>
    %46 = arith.select %44, %26, %45 : vector<32x256xi1>, vector<32x256xi32>
    %cst_21 = arith.constant dense<2147483647> : vector<32xi32>
    %47 = vector.multi_reduction <minsi>, %46, %cst_21 [1] : vector<32x256xi32> to vector<32xi32>
    %48 = vector.shape_cast %47 : vector<32xi32> to vector<32x1xi32>
    %c0_22 = arith.constant 0 : index
    %c1 = arith.constant 1 : index
    %49 = vector.load %arg5[%c0_22, %c1] : memref<32x128xf32, #tpu.memory_space<vmem>>, vector<32x1xf32>
    tpu.vector_store %arg5[%c0_22, %c1], %42 {strides = array<i32>} : memref<32x128xf32, #tpu.memory_space<vmem>>, vector<32x1xf32>,
    %c0_23 = arith.constant 0 : index
    %c1_24 = arith.constant 1 : index
    %50 = vector.load %arg6[%c0_23, %c1_24] : memref<32x128xi32, #tpu.memory_space<vmem>>, vector<32x1xi32>
    tpu.vector_store %arg6[%c0_23, %c1_24], %48 {strides = array<i32>} : memref<32x128xi32, #tpu.memory_space<vmem>>, vector<32x1xi32>,
    %51 = vector.broadcast %48 : vector<32x1xi32> to vector<32x256xi32>
    %52 = arith.cmpi eq, %26, %51 : vector<32x256xi32>
    %cst_25 = arith.constant 0xFF800000 : f32
    %53 = vector.broadcast %cst_25 : f32 to vector<32x256xf32>
    %54 = arith.select %52, %53, %40 : vector<32x256xi1>, vector<32x256xf32>
    %cst_26 = arith.constant dense<0xFF800000> : vector<32xf32>
    %55 = vector.multi_reduction <maximumf>, %54, %cst_26 [1] : vector<32x256xf32> to vector<32xf32>
    %56 = vector.shape_cast %55 : vector<32xf32> to vector<32x1xf32>
    %57 = vector.broadcast %56 : vector<32x1xf32> to vector<32x256xf32>
    %58 = arith.cmpf oeq, %54, %57 : vector<32x256xf32>
    %c1073741824_i32_27 = arith.constant 1073741824 : i32
    %59 = vector.broadcast %c1073741824_i32_27 : i32 to vector<32x256xi32>
    %60 = arith.select %58, %26, %59 : vector<32x256xi1>, vector<32x256xi32>
    %cst_28 = arith.constant dense<2147483647> : vector<32xi32>
    %61 = vector.multi_reduction <minsi>, %60, %cst_28 [1] : vector<32x256xi32> to vector<32xi32>
    %62 = vector.shape_cast %61 : vector<32xi32> to vector<32x1xi32>
    %c0_29 = arith.constant 0 : index
    %c2 = arith.constant 2 : index
    %63 = vector.load %arg5[%c0_29, %c2] : memref<32x128xf32, #tpu.memory_space<vmem>>, vector<32x1xf32>
    tpu.vector_store %arg5[%c0_29, %c2], %56 {strides = array<i32>} : memref<32x128xf32, #tpu.memory_space<vmem>>, vector<32x1xf32>,
    %c0_30 = arith.constant 0 : index
    %c2_31 = arith.constant 2 : index
    %64 = vector.load %arg6[%c0_30, %c2_31] : memref<32x128xi32, #tpu.memory_space<vmem>>, vector<32x1xi32>
    tpu.vector_store %arg6[%c0_30, %c2_31], %62 {strides = array<i32>} : memref<32x128xi32, #tpu.memory_space<vmem>>, vector<32x1xi32>,
    %65 = vector.broadcast %62 : vector<32x1xi32> to vector<32x256xi32>
    %66 = arith.cmpi eq, %26, %65 : vector<32x256xi32>
    %cst_32 = arith.constant 0xFF800000 : f32
    %67 = vector.broadcast %cst_32 : f32 to vector<32x256xf32>
    %68 = arith.select %66, %67, %54 : vector<32x256xi1>, vector<32x256xf32>
    %cst_33 = arith.constant dense<0xFF800000> : vector<32xf32>
    %69 = vector.multi_reduction <maximumf>, %68, %cst_33 [1] : vector<32x256xf32> to vector<32xf32>
    %70 = vector.shape_cast %69 : vector<32xf32> to vector<32x1xf32>
    %71 = vector.broadcast %70 : vector<32x1xf32> to vector<32x256xf32>
    %72 = arith.cmpf oeq, %68, %71 : vector<32x256xf32>
    %c1073741824_i32_34 = arith.constant 1073741824 : i32
    %73 = vector.broadcast %c1073741824_i32_34 : i32 to vector<32x256xi32>
    %74 = arith.select %72, %26, %73 : vector<32x256xi1>, vector<32x256xi32>
    %cst_35 = arith.constant dense<2147483647> : vector<32xi32>
    %75 = vector.multi_reduction <minsi>, %74, %cst_35 [1] : vector<32x256xi32> to vector<32xi32>
    %76 = vector.shape_cast %75 : vector<32xi32> to vector<32x1xi32>
    %c0_36 = arith.constant 0 : index
    %c3 = arith.constant 3 : index
    %77 = vector.load %arg5[%c0_36, %c3] : memref<32x128xf32, #tpu.memory_space<vmem>>, vector<32x1xf32>
    tpu.vector_store %arg5[%c0_36, %c3], %70 {strides = array<i32>} : memref<32x128xf32, #tpu.memory_space<vmem>>, vector<32x1xf32>,
    %c0_37 = arith.constant 0 : index
    %c3_38 = arith.constant 3 : index
    %78 = vector.load %arg6[%c0_37, %c3_38] : memref<32x128xi32, #tpu.memory_space<vmem>>, vector<32x1xi32>
    tpu.vector_store %arg6[%c0_37, %c3_38], %76 {strides = array<i32>} : memref<32x128xi32, #tpu.memory_space<vmem>>, vector<32x1xi32>,
    %c0_i32_39 = arith.constant 0 : i32
    %79 = arith.cmpi eq, %arg1, %c0_i32_39 : i32
    %80 = arith.extui %79 : i1 to i32
    %c0_i32_40 = arith.constant 0 : i32
    %81 = arith.cmpi ne, %80, %c0_i32_40 : i32
    scf.if %81 {
      %c0_41 = arith.constant 0 : index
      %c0_42 = arith.constant 0 : index
      %82 = vector.load %arg6[%c0_41, %c0_42] : memref<32x128xi32, #tpu.memory_space<vmem>>, vector<32x128xi32>
      %c0_43 = arith.constant 0 : index
      %c0_44 = arith.constant 0 : index
      %83 = vector.load %arg4[%c0_43, %c0_44] : memref<32x128xi32, #tpu.memory_space<vmem>>, vector<32x128xi32>
      tpu.vector_store %arg4[%c0_43, %c0_44], %82 {strides = array<i32>} : memref<32x128xi32, #tpu.memory_space<vmem>>, vector<32x128xi32>,
    } else {
    }
    return
  }
  func.func @transform_0(%arg0: i32, %arg1: i32) -> (i32, i32) {
    %c0_i32 = arith.constant 0 : i32
    %c0_i32_0 = arith.constant 0 : i32
    return %arg0, %c0_i32 : i32, i32
  }
  func.func @transform_1(%arg0: i32, %arg1: i32) -> (i32, i32) {
    %c0_i32 = arith.constant 0 : i32
    %c0_i32_0 = arith.constant 0 : i32
    return %arg1, %c0_i32 : i32, i32
  }
  func.func @transform_2(%arg0: i32, %arg1: i32) -> (i32, i32) {
    %c0_i32 = arith.constant 0 : i32
    %c0_i32_0 = arith.constant 0 : i32
    return %arg0, %c0_i32 : i32, i32
  }
}

</mosaic_0001>

<llo_original>
// kernel: tpu_custom_call.1
$region0: #{tpu_custom_call.1}
  #allocation0 [shape = 'u32[]', space=smem, size = 0x4, offset = 0x4, fixed_abs, tag = 'smem constant byte address 0x4 - core index']
  #allocation1 [shape = 'u32[72,128]{1,0:T(1,128)}', space=vmem, size = 0x9000, scoped, tag = 'internal scratch']
  #allocation2 [shape = 'f32[32,128]{1,0:T(8,128)}', space=vmem, size = 0x4000, scoped, tag = 'scratch operand']
  #allocation3 [shape = 's32[32,128]{1,0:T(8,128)}', space=vmem, size = 0x4000, scoped, tag = 'scratch operand']
  %s0 = inlined_call_operand.vmem [shape: bf16[32,16], index: 0, kind: input, shape index: {}]
  %s1 = inlined_call_operand.vmem [shape: bf16[128,16], index: 1, kind: input, shape index: {}]
  %s2 = inlined_call_operand.hbm [shape: s32[32,128], index: 2, kind: output, shape index: {}]
  %s3 = sld [smem:[#allocation0]]
  $region26: #{tpu_custom_call.1} parent=0
    _
  %s5 = ssub.s32 1, %s3
  %s6 = scalar_select 0, %s5, %s3
  $region1: #{tpu_custom_call.1} parent=0
    #allocation4 [shape = 'u8[16384]{0}', space=vmem, size = 0x4000, scoped, tag = 'output window, operand 0, single buffered']
    #allocation5 [shape = 's32[1]{0}', space=sflag, size = 0x4, scoped, tag = 'scoped memory for tpu_custom_call.1']
    %7 = vsyncpa [#allocation5], 0
    // Predicated region
    $region2: #{tpu_custom_call.1} parent=1 // pred_check
      _
    $region3: #{tpu_custom_call.1} parent=1 // pred_check_branch
      %9 = sbr.rel (0) target = $region5
    $region4: #{tpu_custom_call.1} parent=1 // pred_region
      _
    $region5: #{tpu_custom_call.1} parent=1 // pred_fallthru
      _
    // Predicated region
    $region6: #{tpu_custom_call.1} parent=1 // pred_check
      _
    $region7: #{tpu_custom_call.1} parent=1 // pred_check_branch
      %11 = sbr.rel (0) target = $region9
    $region8: #{tpu_custom_call.1} parent=1 // pred_region
      _
    $region9: #{tpu_custom_call.1} parent=1 // pred_fallthru
      _
    %p12 = scmp.eq.s32.totalorder 0, 0
    // Predicated region
    $region10: #{tpu_custom_call.1} parent=1 // pred_check
      %p13 = pneg %p12
    $region11: #{tpu_custom_call.1} parent=1 // pred_check_branch
      %15 = sbr.rel (%p13) target = $region13
    $region12: #{tpu_custom_call.1} parent=1 // pred_region
      %16 = vst [vmem:[#allocation2] sm:$0xff] -inf
      %17 = vst [vmem:[#allocation2 + $0x8] sm:$0xff] -inf
      %18 = vst [vmem:[#allocation2 + $0x10] sm:$0xff] -inf
      %19 = vst [vmem:[#allocation2 + $0x18] sm:$0xff] -inf
      %v20 = vlaneseq
      %v21 = vand.u32 %v20, 127
      %v22 = vadd.s32 %v21, 128
      %23 = vst [vmem:[#allocation3] sm:$0xff] %v22
      %24 = vst [vmem:[#allocation3 + $0x8] sm:$0xff] %v22
      %25 = vst [vmem:[#allocation3 + $0x10] sm:$0xff] %v22
      %26 = vst [vmem:[#allocation3 + $0x18] sm:$0xff] %v22
    $region13: #{tpu_custom_call.1} parent=1 // pred_fallthru
      _
    %v27 = vld [vmem:[%s0] sm:$0xf]
    %v28 = vld [vmem:[%s0 + $0x4] sm:$0xf]
    %v29 = vld [vmem:[%s0 + $0x8] sm:$0xf]
    %v30 = vld [vmem:[%s0 + $0xc] sm:$0xf]
    %v31 = vld [vmem:[%s1] sm:$0xf]
    %v32 = vld [vmem:[%s1 + $0x4] sm:$0xf]
    %v33 = vld [vmem:[%s1 + $0x8] sm:$0xf]
    %v34 = vld [vmem:[%s1 + $0xc] sm:$0xf]
    %v35 = vld [vmem:[%s1 + $0x10] sm:$0xf]
    %v36 = vld [vmem:[%s1 + $0x14] sm:$0xf]
    %v37 = vld [vmem:[%s1 + $0x18] sm:$0xf]
    %v38 = vld [vmem:[%s1 + $0x1c] sm:$0xf]
    %v39 = vld [vmem:[%s1 + $0x20] sm:$0xf]
    %v40 = vld [vmem:[%s1 + $0x24] sm:$0xf]
    %v41 = vld [vmem:[%s1 + $0x28] sm:$0xf]
    %v42 = vld [vmem:[%s1 + $0x2c] sm:$0xf]
    %v43 = vld [vmem:[%s1 + $0x30] sm:$0xf]
    %v44 = vld [vmem:[%s1 + $0x34] sm:$0xf]
    %v45 = vld [vmem:[%s1 + $0x38] sm:$0xf]
    %v46 = vld [vmem:[%s1 + $0x3c] sm:$0xf]
    %v47 = vlaneseq
    %v48 = vand.u32 %v47, 127
    %s49 = smul.u32 0, 128
    %v50 = vstv %s49
    %v51 = vadd.s32 %v48, %v50
    %v52 = vlaneseq
    %v53 = vshrl.u32 %v52, 7
    %v54 = vadd.s32 %v53, 8
    %v55 = vadd.s32 %v53, 16
    %v56 = vadd.s32 %v53, 24
    %s57 = smul.u32 0, 32
    %v58 = vstv %s57
    %v59 = vadd.s32 %v53, %v58
    %v60 = vadd.s32 %v54, %v58
    %v61 = vadd.s32 %v55, %v58
    %v62 = vadd.s32 %v56, %v58
    %vm63 = vcmp.eq.s32.totalorder %v59, %v51
    %vm64 = vcmp.eq.s32.totalorder %v60, %v51
    %vm65 = vcmp.eq.s32.totalorder %v61, %v51
    %vm66 = vcmp.eq.s32.totalorder %v62, %v51
    %v67 = vsel %vm63, 10.0, 0.0
    %v68 = vsel %vm64, 10.0, 0.0
    %v69 = vsel %vm65, 10.0, 0.0
    %v70 = vsel %vm66, 10.0, 0.0
    %v75 = vunpack.c.l.b16 %v27
    %v76 = vunpack.c.l.b16 %v28
    %v77 = vunpack.c.l.b16 %v29
    %v78 = vunpack.c.l.b16 %v30
    %v79 = vpack.c.b16 %v76, %v75
    %v80 = vpack.c.b16 %v78, %v77
    %v97 = vunpack.c.l.b16 %v31
    %v98 = vunpack.c.l.b16 %v32
    %v99 = vunpack.c.l.b16 %v33
    %v100 = vunpack.c.l.b16 %v34
    %v101 = vunpack.c.l.b16 %v35
    %v102 = vunpack.c.l.b16 %v36
    %v103 = vunpack.c.l.b16 %v37
    %v104 = vunpack.c.l.b16 %v38
    %v105 = vunpack.c.l.b16 %v39
    %v106 = vunpack.c.l.b16 %v40
    %v107 = vunpack.c.l.b16 %v41
    %v108 = vunpack.c.l.b16 %v42
    %v109 = vunpack.c.l.b16 %v43
    %v110 = vunpack.c.l.b16 %v44
    %v111 = vunpack.c.l.b16 %v45
    %v112 = vunpack.c.l.b16 %v46
    %v113 = vpack.c.b16 %v98, %v97
    %v114 = vpack.c.b16 %v100, %v99
    %v115 = vpack.c.b16 %v102, %v101
    %v116 = vpack.c.b16 %v104, %v103
    %v117 = vpack.c.b16 %v106, %v105
    %v118 = vpack.c.b16 %v108, %v107
    %v119 = vpack.c.b16 %v110, %v109
    %v120 = vpack.c.b16 %v112, %v111
    %vm121 = vcmask 130048
    %v123 = vsel %vm121, %v79, 0
    %v126 = vsel %vm121, %v80, 0
    %v129 = vsel %vm121, %v113, 0
    %v132 = vsel %vm121, %v114, 0
    %v135 = vsel %vm121, %v115, 0
    %v138 = vsel %vm121, %v116, 0
    %v141 = vsel %vm121, %v117, 0
    %v144 = vsel %vm121, %v118, 0
    %v147 = vsel %vm121, %v119, 0
    %v150 = vsel %vm121, %v120, 0
    %152 = vmatpush.bf16.xpose.msra.mxu0 %v150
    %153 = vmatpush.bf16.xpose.msra.mxu0 %v147
    %154 = vmatpush.bf16.xpose.msra.mxu0 %v144
    %155 = vmatpush.bf16.xpose.msra.mxu0 %v141
    %156 = vmatpush.bf16.xpose.msra.mxu0 %v138
    %157 = vmatpush.bf16.xpose.msra.mxu0 %v135
    %158 = vmatpush.bf16.xpose.msra.mxu0 %v132
    %159 = vmatpush.bf16.xpose.msra.mxu0 %v129
    %160 = vmatmul.bf16.gmra.mxu0 %v123
    %v161 = vpop.f32.mrf.mxu0
    %v162 = vadd.f32 %v67, %v161
    %v163 = vpop.f32.mrf.mxu0
    %v164 = vadd.f32 %v68, %v163
    %165 = vmatmul.bf16.gmra.mxu0 %v126
    %v166 = vpop.f32.mrf.mxu0
    %v167 = vadd.f32 %v69, %v166
    %v168 = vpop.f32.mrf.mxu0
    %v169 = vadd.f32 %v70, %v168
    %170 = vdwg.mxu0
    %vm171 = vcmp.lt.s32.totalorder %v51, 32
    %v172 = vsel %vm171, %v162, -inf
    %v173 = vsel %vm171, %v164, -inf
    %v174 = vsel %vm171, %v167, -inf
    %v175 = vsel %vm171, %v169, -inf
    %v176 = vld [vmem:[#allocation2] sm:$0xff]
    %v177 = vld [vmem:[#allocation2 + $0x8] sm:$0xff]
    %v178 = vld [vmem:[#allocation2 + $0x10] sm:$0xff]
    %v179 = vld [vmem:[#allocation2 + $0x18] sm:$0xff]
    %v180 = vld [vmem:[#allocation3] sm:$0xff]
    %v181 = vld [vmem:[#allocation3 + $0x8] sm:$0xff]
    %v182 = vld [vmem:[#allocation3 + $0x10] sm:$0xff]
    %v183 = vld [vmem:[#allocation3 + $0x18] sm:$0xff]
    %v184 = vmax.f32 %v172, %v176
    %185 = vmax.xlane.f32.xlu0 %v184
    %v186 = vpop.xlane.xlu0 %185
    %v187 = vmax.f32 %v173, %v177
    %188 = vmax.xlane.f32.xlu0 %v187
    %v189 = vpop.xlane.xlu0 %188
    %v190 = vmax.f32 %v174, %v178
    %191 = vmax.xlane.f32.xlu0 %v190
    %v192 = vpop.xlane.xlu0 %191
    %v193 = vmax.f32 %v175, %v179
    %194 = vmax.xlane.f32.xlu0 %v193
    %v195 = vpop.xlane.xlu0 %194
    %vm196 = vcmp.eq.f32.partialorder %v172, %v186
    %vm197 = vcmp.eq.f32.partialorder %v176, %v186
    %vm198 = vcmp.eq.f32.partialorder %v173, %v189
    %vm199 = vcmp.eq.f32.partialorder %v177, %v189
    %vm200 = vcmp.eq.f32.partialorder %v174, %v192
    %vm201 = vcmp.eq.f32.partialorder %v178, %v192
    %vm202 = vcmp.eq.f32.partialorder %v175, %v195
    %vm203 = vcmp.eq.f32.partialorder %v179, %v195
    %v204 = vsel %vm196, %v51, 1073741824
    %v205 = vsel %vm197, %v180, 1073741824
    %v206 = vsel %vm198, %v51, 1073741824
    %v207 = vsel %vm199, %v181, 1073741824
    %v208 = vsel %vm200, %v51, 1073741824
    %v209 = vsel %vm201, %v182, 1073741824
    %v210 = vsel %vm202, %v51, 1073741824
    %v211 = vsel %vm203, %v183, 1073741824
    %vm212 = vcmp.lt.s32.totalorder %v204, %v205
    %v213 = vsel %vm212, %v204, %v205
    %v214 = vand.u32 %v213, 65535
    %v215 = vshra.s32 %v213, 16
    %v216 = vcvt.s32.f32 %v214
    %v217 = vcvt.s32.f32 %v215
    %218 = vmin.xlane.f32.xlu0 %v217
    %v219 = vpop.xlane.xlu0 %218
    %vm220 = vcmp.eq.f32.partialorder %v217, %v219
    %v221 = vsel %vm220, %v216, inf
    %222 = vmin.xlane.f32.xlu0 %v221
    %v223 = vpop.xlane.xlu0 %222
    %v224 = vcvt.f32.s32 %v223
    %v225 = vcvt.f32.s32 %v219
    %v226 = vshll.u32 %v225, 16
    %v227 = vadd.s32 %v226, %v224
    %vm228 = vcmp.lt.s32.totalorder %v206, %v207
    %v229 = vsel %vm228, %v206, %v207
    %v230 = vand.u32 %v229, 65535
    %v231 = vshra.s32 %v229, 16
    %v232 = vcvt.s32.f32 %v230
    %v233 = vcvt.s32.f32 %v231
    %234 = vmin.xlane.f32.xlu0 %v233
    %v235 = vpop.xlane.xlu0 %234
    %vm236 = vcmp.eq.f32.partialorder %v233, %v235
    %v237 = vsel %vm236, %v232, inf
    %238 = vmin.xlane.f32.xlu0 %v237
    %v239 = vpop.xlane.xlu0 %238
    %v240 = vcvt.f32.s32 %v239
    %v241 = vcvt.f32.s32 %v235
    %v242 = vshll.u32 %v241, 16
    %v243 = vadd.s32 %v242, %v240
    %vm244 = vcmp.lt.s32.totalorder %v208, %v209
    %v245 = vsel %vm244, %v208, %v209
    %v246 = vand.u32 %v245, 65535
    %v247 = vshra.s32 %v245, 16
    %v248 = vcvt.s32.f32 %v246
    %v249 = vcvt.s32.f32 %v247
    %250 = vmin.xlane.f32.xlu0 %v249
    %v251 = vpop.xlane.xlu0 %250
    %vm252 = vcmp.eq.f32.partialorder %v249, %v251
    %v253 = vsel %vm252, %v248, inf
    %254 = vmin.xlane.f32.xlu0 %v253
    %v255 = vpop.xlane.xlu0 %254
    %v256 = vcvt.f32.s32 %v255
    %v257 = vcvt.f32.s32 %v251
    %v258 = vshll.u32 %v257, 16
    %v259 = vadd.s32 %v258, %v256
    %vm260 = vcmp.lt.s32.totalorder %v210, %v211
    %v261 = vsel %vm260, %v210, %v211
    %v262 = vand.u32 %v261, 65535
    %v263 = vshra.s32 %v261, 16
    %v264 = vcvt.s32.f32 %v262
    %v265 = vcvt.s32.f32 %v263
    %266 = vmin.xlane.f32.xlu0 %v265
    %v267 = vpop.xlane.xlu0 %266
    %vm268 = vcmp.eq.f32.partialorder %v265, %v267
    %v269 = vsel %vm268, %v264, inf
    %270 = vmin.xlane.f32.xlu0 %v269
    %v271 = vpop.xlane.xlu0 %270
    %v272 = vcvt.f32.s32 %v271
    %v273 = vcvt.f32.s32 %v267
    %v274 = vshll.u32 %v273, 16
    %v275 = vadd.s32 %v274, %v272
    %vm276 = vcmask 7168
    %277 = vst.msk [vmem:[#allocation2] sm:$0xff] %vm276, %v186
    %278 = vst.msk [vmem:[#allocation2 + $0x8] sm:$0xff] %vm276, %v189
    %279 = vst.msk [vmem:[#allocation2 + $0x10] sm:$0xff] %vm276, %v192
    %280 = vst.msk [vmem:[#allocation2 + $0x18] sm:$0xff] %vm276, %v195
    %281 = vst.msk [vmem:[#allocation3] sm:$0xff] %vm276, %v227
    %282 = vst.msk [vmem:[#allocation3 + $0x8] sm:$0xff] %vm276, %v243
    %283 = vst.msk [vmem:[#allocation3 + $0x10] sm:$0xff] %vm276, %v259
    %284 = vst.msk [vmem:[#allocation3 + $0x18] sm:$0xff] %vm276, %v275
    %vm285 = vcmp.eq.s32.totalorder %v51, %v227
    %vm286 = vcmp.eq.s32.totalorder %v180, %v227
    %vm287 = vcmp.eq.s32.totalorder %v51, %v243
    %vm288 = vcmp.eq.s32.totalorder %v181, %v243
    %vm289 = vcmp.eq.s32.totalorder %v51, %v259
    %vm290 = vcmp.eq.s32.totalorder %v182, %v259
    %vm291 = vcmp.eq.s32.totalorder %v51, %v275
    %vm292 = vcmp.eq.s32.totalorder %v183, %v275
    %v293 = vsel %vm285, -inf, %v172
    %v294 = vsel %vm286, -inf, %v176
    %v295 = vsel %vm287, -inf, %v173
    %v296 = vsel %vm288, -inf, %v177
    %v297 = vsel %vm289, -inf, %v174
    %v298 = vsel %vm290, -inf, %v178
    %v299 = vsel %vm291, -inf, %v175
    %v300 = vsel %vm292, -inf, %v179
    %v301 = vmax.f32 %v293, %v294
    %302 = vmax.xlane.f32.xlu0 %v301
    %v303 = vpop.xlane.xlu0 %302
    %v304 = vmax.f32 %v295, %v296
    %305 = vmax.xlane.f32.xlu0 %v304
    %v306 = vpop.xlane.xlu0 %305
    %v307 = vmax.f32 %v297, %v298
    %308 = vmax.xlane.f32.xlu0 %v307
    %v309 = vpop.xlane.xlu0 %308
    %v310 = vmax.f32 %v299, %v300
    %311 = vmax.xlane.f32.xlu0 %v310
    %v312 = vpop.xlane.xlu0 %311
    %vm313 = vcmp.eq.f32.partialorder %v293, %v303
    %vm314 = vcmp.eq.f32.partialorder %v294, %v303
    %vm315 = vcmp.eq.f32.partialorder %v295, %v306
    %vm316 = vcmp.eq.f32.partialorder %v296, %v306
    %vm317 = vcmp.eq.f32.partialorder %v297, %v309
    %vm318 = vcmp.eq.f32.partialorder %v298, %v309
    %vm319 = vcmp.eq.f32.partialorder %v299, %v312
    %vm320 = vcmp.eq.f32.partialorder %v300, %v312
    %v321 = vsel %vm313, %v51, 1073741824
    %v322 = vsel %vm314, %v180, 1073741824
    %v323 = vsel %vm315, %v51, 1073741824
    %v324 = vsel %vm316, %v181, 1073741824
    %v325 = vsel %vm317, %v51, 1073741824
    %v326 = vsel %vm318, %v182, 1073741824
    %v327 = vsel %vm319, %v51, 1073741824
    %v328 = vsel %vm320, %v183, 1073741824
    %vm329 = vcmp.lt.s32.totalorder %v321, %v322
    %v330 = vsel %vm329, %v321, %v322
    %v331 = vand.u32 %v330, 65535
    %v332 = vshra.s32 %v330, 16
    %v333 = vcvt.s32.f32 %v331
    %v334 = vcvt.s32.f32 %v332
    %335 = vmin.xlane.f32.xlu0 %v334
    %v336 = vpop.xlane.xlu0 %335
    %vm337 = vcmp.eq.f32.partialorder %v334, %v336
    %v338 = vsel %vm337, %v333, inf
    %339 = vmin.xlane.f32.xlu0 %v338
    %v340 = vpop.xlane.xlu0 %339
    %v341 = vcvt.f32.s32 %v340
    %v342 = vcvt.f32.s32 %v336
    %v343 = vshll.u32 %v342, 16
    %v344 = vadd.s32 %v343, %v341
    %vm345 = vcmp.lt.s32.totalorder %v323, %v324
    %v346 = vsel %vm345, %v323, %v324
    %v347 = vand.u32 %v346, 65535
    %v348 = vshra.s32 %v346, 16
    %v349 = vcvt.s32.f32 %v347
    %v350 = vcvt.s32.f32 %v348
    %351 = vmin.xlane.f32.xlu0 %v350
    %v352 = vpop.xlane.xlu0 %351
    %vm353 = vcmp.eq.f32.partialorder %v350, %v352
    %v354 = vsel %vm353, %v349, inf
    %355 = vmin.xlane.f32.xlu0 %v354
    %v356 = vpop.xlane.xlu0 %355
    %v357 = vcvt.f32.s32 %v356
    %v358 = vcvt.f32.s32 %v352
    %v359 = vshll.u32 %v358, 16
    %v360 = vadd.s32 %v359, %v357
    %vm361 = vcmp.lt.s32.totalorder %v325, %v326
    %v362 = vsel %vm361, %v325, %v326
    %v363 = vand.u32 %v362, 65535
    %v364 = vshra.s32 %v362, 16
    %v365 = vcvt.s32.f32 %v363
    %v366 = vcvt.s32.f32 %v364
    %367 = vmin.xlane.f32.xlu0 %v366
    %v368 = vpop.xlane.xlu0 %367
    %vm369 = vcmp.eq.f32.partialorder %v366, %v368
    %v370 = vsel %vm369, %v365, inf
    %371 = vmin.xlane.f32.xlu0 %v370
    %v372 = vpop.xlane.xlu0 %371
    %v373 = vcvt.f32.s32 %v372
    %v374 = vcvt.f32.s32 %v368
    %v375 = vshll.u32 %v374, 16
    %v376 = vadd.s32 %v375, %v373
    %vm377 = vcmp.lt.s32.totalorder %v327, %v328
    %v378 = vsel %vm377, %v327, %v328
    %v379 = vand.u32 %v378, 65535
    %v380 = vshra.s32 %v378, 16
    %v381 = vcvt.s32.f32 %v379
    %v382 = vcvt.s32.f32 %v380
    %383 = vmin.xlane.f32.xlu0 %v382
    %v384 = vpop.xlane.xlu0 %383
    %vm385 = vcmp.eq.f32.partialorder %v382, %v384
    %v386 = vsel %vm385, %v381, inf
    %387 = vmin.xlane.f32.xlu0 %v386
    %v388 = vpop.xlane.xlu0 %387
    %v389 = vcvt.f32.s32 %v388
    %v390 = vcvt.f32.s32 %v384
    %v391 = vshll.u32 %v390, 16
    %v392 = vadd.s32 %v391, %v389
    %vm393 = vcmask 15368
    %394 = vst.msk [vmem:[#allocation2] sm:$0xff] %vm393, %v303
    %395 = vst.msk [vmem:[#allocation2 + $0x8] sm:$0xff] %vm393, %v306
    %396 = vst.msk [vmem:[#allocation2 + $0x10] sm:$0xff] %vm393, %v309
    %397 = vst.msk [vmem:[#allocation2 + $0x18] sm:$0xff] %vm393, %v312
    %398 = vst.msk [vmem:[#allocation3] sm:$0xff] %vm393, %v344
    %399 = vst.msk [vmem:[#allocation3 + $0x8] sm:$0xff] %vm393, %v360
    %400 = vst.msk [vmem:[#allocation3 + $0x10] sm:$0xff] %vm393, %v376
    %401 = vst.msk [vmem:[#allocation3 + $0x18] sm:$0xff] %vm393, %v392
    %vm402 = vcmp.eq.s32.totalorder %v51, %v344
    %vm403 = vcmp.eq.s32.totalorder %v180, %v344
    %vm404 = vcmp.eq.s32.totalorder %v51, %v360
    %vm405 = vcmp.eq.s32.totalorder %v181, %v360
    %vm406 = vcmp.eq.s32.totalorder %v51, %v376
    %vm407 = vcmp.eq.s32.totalorder %v182, %v376
    %vm408 = vcmp.eq.s32.totalorder %v51, %v392
    %vm409 = vcmp.eq.s32.totalorder %v183, %v392
    %v410 = vsel %vm402, -inf, %v293
    %v411 = vsel %vm403, -inf, %v294
    %v412 = vsel %vm404, -inf, %v295
    %v413 = vsel %vm405, -inf, %v296
    %v414 = vsel %vm406, -inf, %v297
    %v415 = vsel %vm407, -inf, %v298
    %v416 = vsel %vm408, -inf, %v299
    %v417 = vsel %vm409, -inf, %v300
    %v418 = vmax.f32 %v410, %v411
    %419 = vmax.xlane.f32.xlu0 %v418
    %v420 = vpop.xlane.xlu0 %419
    %v421 = vmax.f32 %v412, %v413
    %422 = vmax.xlane.f32.xlu0 %v421
    %v423 = vpop.xlane.xlu0 %422
    %v424 = vmax.f32 %v414, %v415
    %425 = vmax.xlane.f32.xlu0 %v424
    %v426 = vpop.xlane.xlu0 %425
    %v427 = vmax.f32 %v416, %v417
    %428 = vmax.xlane.f32.xlu0 %v427
    %v429 = vpop.xlane.xlu0 %428
    %vm430 = vcmp.eq.f32.partialorder %v410, %v420
    %vm431 = vcmp.eq.f32.partialorder %v411, %v420
    %vm432 = vcmp.eq.f32.partialorder %v412, %v423
    %vm433 = vcmp.eq.f32.partialorder %v413, %v423
    %vm434 = vcmp.eq.f32.partialorder %v414, %v426
    %vm435 = vcmp.eq.f32.partialorder %v415, %v426
    %vm436 = vcmp.eq.f32.partialorder %v416, %v429
    %vm437 = vcmp.eq.f32.partialorder %v417, %v429
    %v438 = vsel %vm430, %v51, 1073741824
    %v439 = vsel %vm431, %v180, 1073741824
    %v440 = vsel %vm432, %v51, 1073741824
    %v441 = vsel %vm433, %v181, 1073741824
    %v442 = vsel %vm434, %v51, 1073741824
    %v443 = vsel %vm435, %v182, 1073741824
    %v444 = vsel %vm436, %v51, 1073741824
    %v445 = vsel %vm437, %v183, 1073741824
    %vm446 = vcmp.lt.s32.totalorder %v438, %v439
    %v447 = vsel %vm446, %v438, %v439
    %v448 = vand.u32 %v447, 65535
    %v449 = vshra.s32 %v447, 16
    %v450 = vcvt.s32.f32 %v448
    %v451 = vcvt.s32.f32 %v449
    %452 = vmin.xlane.f32.xlu0 %v451
    %v453 = vpop.xlane.xlu0 %452
    %vm454 = vcmp.eq.f32.partialorder %v451, %v453
    %v455 = vsel %vm454, %v450, inf
    %456 = vmin.xlane.f32.xlu0 %v455
    %v457 = vpop.xlane.xlu0 %456
    %v458 = vcvt.f32.s32 %v457
    %v459 = vcvt.f32.s32 %v453
    %v460 = vshll.u32 %v459, 16
    %v461 = vadd.s32 %v460, %v458
    %vm462 = vcmp.lt.s32.totalorder %v440, %v441
    %v463 = vsel %vm462, %v440, %v441
    %v464 = vand.u32 %v463, 65535
    %v465 = vshra.s32 %v463, 16
    %v466 = vcvt.s32.f32 %v464
    %v467 = vcvt.s32.f32 %v465
    %468 = vmin.xlane.f32.xlu0 %v467
    %v469 = vpop.xlane.xlu0 %468
    %vm470 = vcmp.eq.f32.partialorder %v467, %v469
    %v471 = vsel %vm470, %v466, inf
    %472 = vmin.xlane.f32.xlu0 %v471
    %v473 = vpop.xlane.xlu0 %472
    %v474 = vcvt.f32.s32 %v473
    %v475 = vcvt.f32.s32 %v469
    %v476 = vshll.u32 %v475, 16
    %v477 = vadd.s32 %v476, %v474
    %vm478 = vcmp.lt.s32.totalorder %v442, %v443
    %v479 = vsel %vm478, %v442, %v443
    %v480 = vand.u32 %v479, 65535
    %v481 = vshra.s32 %v479, 16
    %v482 = vcvt.s32.f32 %v480
    %v483 = vcvt.s32.f32 %v481
    %484 = vmin.xlane.f32.xlu0 %v483
    %v485 = vpop.xlane.xlu0 %484
    %vm486 = vcmp.eq.f32.partialorder %v483, %v485
    %v487 = vsel %vm486, %v482, inf
    %488 = vmin.xlane.f32.xlu0 %v487
    %v489 = vpop.xlane.xlu0 %488
    %v490 = vcvt.f32.s32 %v489
    %v491 = vcvt.f32.s32 %v485
    %v492 = vshll.u32 %v491, 16
    %v493 = vadd.s32 %v492, %v490
    %vm494 = vcmp.lt.s32.totalorder %v444, %v445
    %v495 = vsel %vm494, %v444, %v445
    %v496 = vand.u32 %v495, 65535
    %v497 = vshra.s32 %v495, 16
    %v498 = vcvt.s32.f32 %v496
    %v499 = vcvt.s32.f32 %v497
    %500 = vmin.xlane.f32.xlu0 %v499
    %v501 = vpop.xlane.xlu0 %500
    %vm502 = vcmp.eq.f32.partialorder %v499, %v501
    %v503 = vsel %vm502, %v498, inf
    %504 = vmin.xlane.f32.xlu0 %v503
    %v505 = vpop.xlane.xlu0 %504
    %v506 = vcvt.f32.s32 %v505
    %v507 = vcvt.f32.s32 %v501
    %v508 = vshll.u32 %v507, 16
    %v509 = vadd.s32 %v508, %v506
    %vm510 = vcmask 23568
    %511 = vst.msk [vmem:[#allocation2] sm:$0xff] %vm510, %v420
    %512 = vst.msk [vmem:[#allocation2 + $0x8] sm:$0xff] %vm510, %v423
    %513 = vst.msk [vmem:[#allocation2 + $0x10] sm:$0xff] %vm510, %v426
    %514 = vst.msk [vmem:[#allocation2 + $0x18] sm:$0xff] %vm510, %v429
    %515 = vst.msk [vmem:[#allocation3] sm:$0xff] %vm510, %v461
    %516 = vst.msk [vmem:[#allocation3 + $0x8] sm:$0xff] %vm510, %v477
    %517 = vst.msk [vmem:[#allocation3 + $0x10] sm:$0xff] %vm510, %v493
    %518 = vst.msk [vmem:[#allocation3 + $0x18] sm:$0xff] %vm510, %v509
    %vm519 = vcmp.eq.s32.totalorder %v51, %v461
    %vm520 = vcmp.eq.s32.totalorder %v180, %v461
    %vm521 = vcmp.eq.s32.totalorder %v51, %v477
    %vm522 = vcmp.eq.s32.totalorder %v181, %v477
    %vm523 = vcmp.eq.s32.totalorder %v51, %v493
    %vm524 = vcmp.eq.s32.totalorder %v182, %v493
    %vm525 = vcmp.eq.s32.totalorder %v51, %v509
    %vm526 = vcmp.eq.s32.totalorder %v183, %v509
    %v527 = vsel %vm519, -inf, %v410
    %v528 = vsel %vm520, -inf, %v411
    %v529 = vsel %vm521, -inf, %v412
    %v530 = vsel %vm522, -inf, %v413
    %v531 = vsel %vm523, -inf, %v414
    %v532 = vsel %vm524, -inf, %v415
    %v533 = vsel %vm525, -inf, %v416
    %v534 = vsel %vm526, -inf, %v417
    %v535 = vmax.f32 %v527, %v528
    %536 = vmax.xlane.f32.xlu0 %v535
    %v537 = vpop.xlane.xlu0 %536
    %v538 = vmax.f32 %v529, %v530
    %539 = vmax.xlane.f32.xlu0 %v538
    %v540 = vpop.xlane.xlu0 %539
    %v541 = vmax.f32 %v531, %v532
    %542 = vmax.xlane.f32.xlu0 %v541
    %v543 = vpop.xlane.xlu0 %542
    %v544 = vmax.f32 %v533, %v534
    %545 = vmax.xlane.f32.xlu0 %v544
    %v546 = vpop.xlane.xlu0 %545
    %vm547 = vcmp.eq.f32.partialorder %v527, %v537
    %vm548 = vcmp.eq.f32.partialorder %v528, %v537
    %vm549 = vcmp.eq.f32.partialorder %v529, %v540
    %vm550 = vcmp.eq.f32.partialorder %v530, %v540
    %vm551 = vcmp.eq.f32.partialorder %v531, %v543
    %vm552 = vcmp.eq.f32.partialorder %v532, %v543
    %vm553 = vcmp.eq.f32.partialorder %v533, %v546
    %vm554 = vcmp.eq.f32.partialorder %v534, %v546
    %v555 = vsel %vm547, %v51, 1073741824
    %v556 = vsel %vm548, %v180, 1073741824
    %v557 = vsel %vm549, %v51, 1073741824
    %v558 = vsel %vm550, %v181, 1073741824
    %v559 = vsel %vm551, %v51, 1073741824
    %v560 = vsel %vm552, %v182, 1073741824
    %v561 = vsel %vm553, %v51, 1073741824
    %v562 = vsel %vm554, %v183, 1073741824
    %vm563 = vcmp.lt.s32.totalorder %v555, %v556
    %v564 = vsel %vm563, %v555, %v556
    %v565 = vand.u32 %v564, 65535
    %v566 = vshra.s32 %v564, 16
    %v567 = vcvt.s32.f32 %v565
    %v568 = vcvt.s32.f32 %v566
    %569 = vmin.xlane.f32.xlu0 %v568
    %v570 = vpop.xlane.xlu0 %569
    %vm571 = vcmp.eq.f32.partialorder %v568, %v570
    %v572 = vsel %vm571, %v567, inf
    %573 = vmin.xlane.f32.xlu0 %v572
    %v574 = vpop.xlane.xlu0 %573
    %v575 = vcvt.f32.s32 %v574
    %v576 = vcvt.f32.s32 %v570
    %v577 = vshll.u32 %v576, 16
    %v578 = vadd.s32 %v577, %v575
    %vm579 = vcmp.lt.s32.totalorder %v557, %v558
    %v580 = vsel %vm579, %v557, %v558
    %v581 = vand.u32 %v580, 65535
    %v582 = vshra.s32 %v580, 16
    %v583 = vcvt.s32.f32 %v581
    %v584 = vcvt.s32.f32 %v582
    %585 = vmin.xlane.f32.xlu0 %v584
    %v586 = vpop.xlane.xlu0 %585
    %vm587 = vcmp.eq.f32.partialorder %v584, %v586
    %v588 = vsel %vm587, %v583, inf
    %589 = vmin.xlane.f32.xlu0 %v588
    %v590 = vpop.xlane.xlu0 %589
    %v591 = vcvt.f32.s32 %v590
    %v592 = vcvt.f32.s32 %v586
    %v593 = vshll.u32 %v592, 16
    %v594 = vadd.s32 %v593, %v591
    %vm595 = vcmp.lt.s32.totalorder %v559, %v560
    %v596 = vsel %vm595, %v559, %v560
    %v597 = vand.u32 %v596, 65535
    %v598 = vshra.s32 %v596, 16
    %v599 = vcvt.s32.f32 %v597
    %v600 = vcvt.s32.f32 %v598
    %601 = vmin.xlane.f32.xlu0 %v600
    %v602 = vpop.xlane.xlu0 %601
    %vm603 = vcmp.eq.f32.partialorder %v600, %v602
    %v604 = vsel %vm603, %v599, inf
    %605 = vmin.xlane.f32.xlu0 %v604
    %v606 = vpop.xlane.xlu0 %605
    %v607 = vcvt.f32.s32 %v606
    %v608 = vcvt.f32.s32 %v602
    %v609 = vshll.u32 %v608, 16
    %v610 = vadd.s32 %v609, %v607
    %vm611 = vcmp.lt.s32.totalorder %v561, %v562
    %v612 = vsel %vm611, %v561, %v562
    %v613 = vand.u32 %v612, 65535
    %v614 = vshra.s32 %v612, 16
    %v615 = vcvt.s32.f32 %v613
    %v616 = vcvt.s32.f32 %v614
    %617 = vmin.xlane.f32.xlu0 %v616
    %v618 = vpop.xlane.xlu0 %617
    %vm619 = vcmp.eq.f32.partialorder %v616, %v618
    %v620 = vsel %vm619, %v615, inf
    %621 = vmin.xlane.f32.xlu0 %v620
    %v622 = vpop.xlane.xlu0 %621
    %v623 = vcvt.f32.s32 %v622
    %v624 = vcvt.f32.s32 %v618
    %v625 = vshll.u32 %v624, 16
    %v626 = vadd.s32 %v625, %v623
    %vm627 = vcmask 31768
    %628 = vst.msk [vmem:[#allocation2] sm:$0xff] %vm627, %v537
    %629 = vst.msk [vmem:[#allocation2 + $0x8] sm:$0xff] %vm627, %v540
    %630 = vst.msk [vmem:[#allocation2 + $0x10] sm:$0xff] %vm627, %v543
    %631 = vst.msk [vmem:[#allocation2 + $0x18] sm:$0xff] %vm627, %v546
    %632 = vst.msk [vmem:[#allocation3] sm:$0xff] %vm627, %v578
    %633 = vst.msk [vmem:[#allocation3 + $0x8] sm:$0xff] %vm627, %v594
    %634 = vst.msk [vmem:[#allocation3 + $0x10] sm:$0xff] %vm627, %v610
    %635 = vst.msk [vmem:[#allocation3 + $0x18] sm:$0xff] %vm627, %v626
    // Predicated region
    $region14: #{tpu_custom_call.1} parent=1 // pred_check
      %p636 = pneg %p12
    $region15: #{tpu_custom_call.1} parent=1 // pred_check_branch
      %638 = sbr.rel (%p636) target = $region17
    $region16: #{tpu_custom_call.1} parent=1 // pred_region
      %v639 = vld [vmem:[#allocation3] sm:$0xff]
      %v640 = vld [vmem:[#allocation3 + $0x8] sm:$0xff]
      %v641 = vld [vmem:[#allocation3 + $0x10] sm:$0xff]
      %v642 = vld [vmem:[#allocation3 + $0x18] sm:$0xff]
      %643 = vst [vmem:[#allocation4] sm:$0xff] %v639
      %644 = vst [vmem:[#allocation4 + $0x8] sm:$0xff] %v640
      %645 = vst [vmem:[#allocation4 + $0x10] sm:$0xff] %v641
      %646 = vst [vmem:[#allocation4 + $0x18] sm:$0xff] %v642
    $region17: #{tpu_custom_call.1} parent=1 // pred_fallthru
      _
    // Predicated region
    $region18: #{tpu_custom_call.1} parent=1 // pred_check
      _
    $region19: #{tpu_custom_call.1} parent=1 // pred_check_branch
      %648 = sbr.rel (0) target = $region21
    $region20: #{tpu_custom_call.1} parent=1 // pred_region
      %650 = vsyncadd [#allocation5], 0
      %s651 = sshll.u32 [#allocation4], 4
      %s652 = int_to_ptr.vmem [resolvable:$true] %s651
      %s653 = sshll.u32 %s2, 4
      %s654 = int_to_ptr.hbm [resolvable:$true] %s653
      %659 = dma.vmem_to_hbm [thread:$0]  %s652, 512, %s654, [#allocation5], 128, 128, 8
    $region21: #{tpu_custom_call.1} parent=1 // pred_fallthru
      _
    // Predicated region
    $region22: #{tpu_custom_call.1} parent=1 // pred_check
      _
    $region23: #{tpu_custom_call.1} parent=1 // pred_check_branch
      %661 = sbr.rel (0) target = $region25
    $region24: #{tpu_custom_call.1} parent=1 // pred_region
      %663 = dma.done [#allocation5], 512
    $region25: #{tpu_custom_call.1} parent=1 // pred_fallthru
      _
    %664 = vsyncpa [#allocation5], 1

</llo_original>
